<compile_context>
chip_gen: v5e
topology: v5e:2x2
jax: 0.10.0
libtpu: 0.0.40
codegen_flags: <defaults>
</compile_context>

<pallas_src>
import jax
import jax.numpy as jnp
from jax.experimental import pallas as pl
from jax.experimental.pallas import tpu as pltpu

IN_F = 12   # fc1 in_features
HID = 6     # fc1 out_features
OUT_F = 1   # fc2 out_features


def mlp_kernel(w1_ref, b1_ref, w2_ref, b2_ref, x_ref, o_ref):
    # w1_ref: SMEM (72,)  fc1 weight, row-major (out=6, in=12)
    # b1_ref: SMEM (6,)   fc1 bias
    # w2_ref: SMEM (6,)   fc2 weight
    # b2_ref: SMEM (1,)   fc2 bias
    # x_ref : VMEM (12, TB)  features on sublanes, batch on lanes
    # o_ref : VMEM (1, TB)   lane-dense output
    # Load each input-feature row exactly once (hoisted out of the unrolled
    # loops); everything below is scalar-splat * vreg VPU mul-adds.
    xr = [x_ref[k:k + 1, :] for k in range(IN_F)]           # 12 x (1, TB)

    acc = None
    for j in range(HID):
        # h_j = relu( sum_k w1[j,k] * x[k,:] + b1[j] )
        h = xr[0] * w1_ref[j * IN_F] + b1_ref[j]
        for k in range(1, IN_F):
            h = h + xr[k] * w1_ref[j * IN_F + k]
        h = jnp.maximum(h, 0.0)                             # ReLU
        # Dropout(0.3) in eval mode == identity.
        contrib = h * w2_ref[j]                             # fc2 partial
        acc = contrib if acc is None else acc + contrib
    o_ref[...] = acc + b2_ref[0]                            # + fc2 bias


def _round_up(n, m):
    return ((n + m - 1) // m) * m


def net_forward(x, w1, b1, w2, b2, *, tb=8192):
    """x: (B, 12) f32. PyTorch-layout params: w1 (6,12), b1 (6,), w2 (1,6), b2 (1,)."""
    x = jnp.asarray(x, jnp.float32)
    B = x.shape[0]

    # Batch tile (lane axis): multiple of 128; clamp so small batches don't
    # over-pad.  tb=8192 keeps double-buffered VMEM usage well under 1 MiB,
    # safe for v7x's smaller (64 MiB) VMEM.
    tb = max(128, min(tb, _round_up(B, 128)))
    B_pad = _round_up(B, tb)

    # Lane-dense layout: batch on the 128-lane axis, features on sublanes.
    x_t = jnp.pad(x.T, ((0, 0), (0, B_pad - B)))            # (12, B_pad)

    # Flatten params for cheap scalar reads from SMEM inside the kernel.
    w1_flat = jnp.asarray(w1, jnp.float32).reshape(-1)      # (72,)
    b1_flat = jnp.asarray(b1, jnp.float32).reshape(-1)      # (6,)
    w2_flat = jnp.asarray(w2, jnp.float32).reshape(-1)      # (6,)
    b2_flat = jnp.asarray(b2, jnp.float32).reshape(-1)      # (1,)

    out_t = pl.pallas_call(
        mlp_kernel,
        out_shape=jax.ShapeDtypeStruct((OUT_F, B_pad), jnp.float32),
        grid=(B_pad // tb,),
        in_specs=[
            pl.BlockSpec(memory_space=pltpu.SMEM),          # w1 (whole, resident)
            pl.BlockSpec(memory_space=pltpu.SMEM),          # b1
            pl.BlockSpec(memory_space=pltpu.SMEM),          # w2
            pl.BlockSpec(memory_space=pltpu.SMEM),          # b2
            pl.BlockSpec((IN_F, tb), lambda i: (0, i)),     # x, batch-tiled
        ],
        out_specs=pl.BlockSpec((OUT_F, tb), lambda i: (0, i)),
        compiler_params=pltpu.CompilerParams(
            dimension_semantics=("parallel",)),
        cost_estimate=pl.CostEstimate(
            flops=2 * B_pad * (IN_F * HID + HID),
            transcendentals=0,
            bytes_accessed=B_pad * (IN_F + OUT_F) * 4),
    )(w1_flat, b1_flat, w2_flat, b2_flat, x_t)

    # Drop the padded tail and restore PyTorch's (B, 1) output shape.
    return out_t[0, :B].reshape(B, 1)


def net_forward_ref(x, w1, b1, w2, b2):
    """Pure-JAX reference (PyTorch semantics, eval-mode dropout)."""
    h = jnp.maximum(x @ w1.T + b1, 0.0)
    return h @ w2.T + b2


if __name__ == "__main__":
    key = jax.random.PRNGKey(0)
    kx, k1, k2, k3, k4 = jax.random.split(key, 5)

    B = 8
    x = jax.random.normal(kx, (B, IN_F), dtype=jnp.float32)

    # Deterministic params (PyTorch nn.Linear layout: weight (out,in), bias (out,))
    w1 = jax.random.normal(k1, (HID, IN_F), dtype=jnp.float32) * 0.2
    b1 = jax.random.normal(k2, (HID,), dtype=jnp.float32) * 0.1
    w2 = jax.random.normal(k3, (OUT_F, HID), dtype=jnp.float32) * 0.2
    b2 = jax.random.normal(k4, (OUT_F,), dtype=jnp.float32) * 0.1

    out = jax.block_until_ready(net_forward(x, w1, b1, w2, b2))
    ref = net_forward_ref(x, w1, b1, w2, b2)
    assert out.shape == (B, 1), out.shape
    assert jnp.allclose(out, ref, atol=1e-5, rtol=1e-5), (out, ref)

    print("KERNEL_OK")
</pallas_src>

<mosaic_0001>
module attributes {stable_mosaic.version = 11 : i64} {
  func.func @mlp_kernel(%arg0: i32, %arg1: memref<72xf32, #tpu.memory_space<smem>>, %arg2: memref<6xf32, #tpu.memory_space<smem>>, %arg3: memref<6xf32, #tpu.memory_space<smem>>, %arg4: memref<1xf32, #tpu.memory_space<smem>>, %arg5: memref<12x128xf32, #tpu.memory_space<vmem>>, %arg6: memref<1x128xf32, #tpu.memory_space<vmem>>) attributes {dimension_semantics = [#tpu.dimension_semantics<parallel>], iteration_bounds = array<i64: 1>, scalar_prefetch = 0 : i64, scratch_operands = 0 : i64, tpu.core_type = #tpu.core_type<tc>, window_params = [{transform_indices = @transform_0, window_bounds = array<i64: 72>}, {transform_indices = @transform_1, window_bounds = array<i64: 6>}, {transform_indices = @transform_2, window_bounds = array<i64: 6>}, {transform_indices = @transform_3, window_bounds = array<i64: 1>}, {transform_indices = @transform_4, window_bounds = array<i64: 12, 128>}, {transform_indices = @transform_5, window_bounds = array<i64: 1, 128>}]} {
    %c0 = arith.constant 0 : index
    %c0_0 = arith.constant 0 : index
    %0 = vector.load %arg5[%c0, %c0_0] : memref<12x128xf32, #tpu.memory_space<vmem>>, vector<1x128xf32>
    %c1 = arith.constant 1 : index
    %c0_1 = arith.constant 0 : index
    %1 = vector.load %arg5[%c1, %c0_1] : memref<12x128xf32, #tpu.memory_space<vmem>>, vector<1x128xf32>
    %c2 = arith.constant 2 : index
    %c0_2 = arith.constant 0 : index
    %2 = vector.load %arg5[%c2, %c0_2] : memref<12x128xf32, #tpu.memory_space<vmem>>, vector<1x128xf32>
    %c3 = arith.constant 3 : index
    %c0_3 = arith.constant 0 : index
    %3 = vector.load %arg5[%c3, %c0_3] : memref<12x128xf32, #tpu.memory_space<vmem>>, vector<1x128xf32>
    %c4 = arith.constant 4 : index
    %c0_4 = arith.constant 0 : index
    %4 = vector.load %arg5[%c4, %c0_4] : memref<12x128xf32, #tpu.memory_space<vmem>>, vector<1x128xf32>
    %c5 = arith.constant 5 : index
    %c0_5 = arith.constant 0 : index
    %5 = vector.load %arg5[%c5, %c0_5] : memref<12x128xf32, #tpu.memory_space<vmem>>, vector<1x128xf32>
    %c6 = arith.constant 6 : index
    %c0_6 = arith.constant 0 : index
    %6 = vector.load %arg5[%c6, %c0_6] : memref<12x128xf32, #tpu.memory_space<vmem>>, vector<1x128xf32>
    %c7 = arith.constant 7 : index
    %c0_7 = arith.constant 0 : index
    %7 = vector.load %arg5[%c7, %c0_7] : memref<12x128xf32, #tpu.memory_space<vmem>>, vector<1x128xf32>
    %c8 = arith.constant 8 : index
    %c0_8 = arith.constant 0 : index
    %8 = vector.load %arg5[%c8, %c0_8] : memref<12x128xf32, #tpu.memory_space<vmem>>, vector<1x128xf32>
    %c9 = arith.constant 9 : index
    %c0_9 = arith.constant 0 : index
    %9 = vector.load %arg5[%c9, %c0_9] : memref<12x128xf32, #tpu.memory_space<vmem>>, vector<1x128xf32>
    %c10 = arith.constant 10 : index
    %c0_10 = arith.constant 0 : index
    %10 = vector.load %arg5[%c10, %c0_10] : memref<12x128xf32, #tpu.memory_space<vmem>>, vector<1x128xf32>
    %c11 = arith.constant 11 : index
    %c0_11 = arith.constant 0 : index
    %11 = vector.load %arg5[%c11, %c0_11] : memref<12x128xf32, #tpu.memory_space<vmem>>, vector<1x128xf32>
    %c0_12 = arith.constant 0 : index
    %12 = memref.load %arg1[%c0_12] : memref<72xf32, #tpu.memory_space<smem>>
    %13 = vector.broadcast %12 : f32 to vector<1x128xf32>
    %14 = arith.mulf %0, %13 : vector<1x128xf32>
    %c0_13 = arith.constant 0 : index
    %15 = memref.load %arg2[%c0_13] : memref<6xf32, #tpu.memory_space<smem>>
    %16 = vector.broadcast %15 : f32 to vector<1x128xf32>
    %17 = arith.addf %14, %16 : vector<1x128xf32>
    %c1_14 = arith.constant 1 : index
    %18 = memref.load %arg1[%c1_14] : memref<72xf32, #tpu.memory_space<smem>>
    %19 = vector.broadcast %18 : f32 to vector<1x128xf32>
    %20 = arith.mulf %1, %19 : vector<1x128xf32>
    %21 = arith.addf %17, %20 : vector<1x128xf32>
    %c2_15 = arith.constant 2 : index
    %22 = memref.load %arg1[%c2_15] : memref<72xf32, #tpu.memory_space<smem>>
    %23 = vector.broadcast %22 : f32 to vector<1x128xf32>
    %24 = arith.mulf %2, %23 : vector<1x128xf32>
    %25 = arith.addf %21, %24 : vector<1x128xf32>
    %c3_16 = arith.constant 3 : index
    %26 = memref.load %arg1[%c3_16] : memref<72xf32, #tpu.memory_space<smem>>
    %27 = vector.broadcast %26 : f32 to vector<1x128xf32>
    %28 = arith.mulf %3, %27 : vector<1x128xf32>
    %29 = arith.addf %25, %28 : vector<1x128xf32>
    %c4_17 = arith.constant 4 : index
    %30 = memref.load %arg1[%c4_17] : memref<72xf32, #tpu.memory_space<smem>>
    %31 = vector.broadcast %30 : f32 to vector<1x128xf32>
    %32 = arith.mulf %4, %31 : vector<1x128xf32>
    %33 = arith.addf %29, %32 : vector<1x128xf32>
    %c5_18 = arith.constant 5 : index
    %34 = memref.load %arg1[%c5_18] : memref<72xf32, #tpu.memory_space<smem>>
    %35 = vector.broadcast %34 : f32 to vector<1x128xf32>
    %36 = arith.mulf %5, %35 : vector<1x128xf32>
    %37 = arith.addf %33, %36 : vector<1x128xf32>
    %c6_19 = arith.constant 6 : index
    %38 = memref.load %arg1[%c6_19] : memref<72xf32, #tpu.memory_space<smem>>
    %39 = vector.broadcast %38 : f32 to vector<1x128xf32>
    %40 = arith.mulf %6, %39 : vector<1x128xf32>
    %41 = arith.addf %37, %40 : vector<1x128xf32>
    %c7_20 = arith.constant 7 : index
    %42 = memref.load %arg1[%c7_20] : memref<72xf32, #tpu.memory_space<smem>>
    %43 = vector.broadcast %42 : f32 to vector<1x128xf32>
    %44 = arith.mulf %7, %43 : vector<1x128xf32>
    %45 = arith.addf %41, %44 : vector<1x128xf32>
    %c8_21 = arith.constant 8 : index
    %46 = memref.load %arg1[%c8_21] : memref<72xf32, #tpu.memory_space<smem>>
    %47 = vector.broadcast %46 : f32 to vector<1x128xf32>
    %48 = arith.mulf %8, %47 : vector<1x128xf32>
    %49 = arith.addf %45, %48 : vector<1x128xf32>
    %c9_22 = arith.constant 9 : index
    %50 = memref.load %arg1[%c9_22] : memref<72xf32, #tpu.memory_space<smem>>
    %51 = vector.broadcast %50 : f32 to vector<1x128xf32>
    %52 = arith.mulf %9, %51 : vector<1x128xf32>
    %53 = arith.addf %49, %52 : vector<1x128xf32>
    %c10_23 = arith.constant 10 : index
    %54 = memref.load %arg1[%c10_23] : memref<72xf32, #tpu.memory_space<smem>>
    %55 = vector.broadcast %54 : f32 to vector<1x128xf32>
    %56 = arith.mulf %10, %55 : vector<1x128xf32>
    %57 = arith.addf %53, %56 : vector<1x128xf32>
    %c11_24 = arith.constant 11 : index
    %58 = memref.load %arg1[%c11_24] : memref<72xf32, #tpu.memory_space<smem>>
    %59 = vector.broadcast %58 : f32 to vector<1x128xf32>
    %60 = arith.mulf %11, %59 : vector<1x128xf32>
    %61 = arith.addf %57, %60 : vector<1x128xf32>
    %cst = arith.constant 0.000000e+00 : f32
    %62 = vector.broadcast %cst : f32 to vector<1x128xf32>
    %63 = arith.maximumf %61, %62 : vector<1x128xf32>
    %c0_25 = arith.constant 0 : index
    %64 = memref.load %arg3[%c0_25] : memref<6xf32, #tpu.memory_space<smem>>
    %65 = vector.broadcast %64 : f32 to vector<1x128xf32>
    %66 = arith.mulf %63, %65 : vector<1x128xf32>
    %c12 = arith.constant 12 : index
    %67 = memref.load %arg1[%c12] : memref<72xf32, #tpu.memory_space<smem>>
    %68 = vector.broadcast %67 : f32 to vector<1x128xf32>
    %69 = arith.mulf %0, %68 : vector<1x128xf32>
    %c1_26 = arith.constant 1 : index
    %70 = memref.load %arg2[%c1_26] : memref<6xf32, #tpu.memory_space<smem>>
    %71 = vector.broadcast %70 : f32 to vector<1x128xf32>
    %72 = arith.addf %69, %71 : vector<1x128xf32>
    %c13 = arith.constant 13 : index
    %73 = memref.load %arg1[%c13] : memref<72xf32, #tpu.memory_space<smem>>
    %74 = vector.broadcast %73 : f32 to vector<1x128xf32>
    %75 = arith.mulf %1, %74 : vector<1x128xf32>
    %76 = arith.addf %72, %75 : vector<1x128xf32>
    %c14 = arith.constant 14 : index
    %77 = memref.load %arg1[%c14] : memref<72xf32, #tpu.memory_space<smem>>
    %78 = vector.broadcast %77 : f32 to vector<1x128xf32>
    %79 = arith.mulf %2, %78 : vector<1x128xf32>
    %80 = arith.addf %76, %79 : vector<1x128xf32>
    %c15 = arith.constant 15 : index
    %81 = memref.load %arg1[%c15] : memref<72xf32, #tpu.memory_space<smem>>
    %82 = vector.broadcast %81 : f32 to vector<1x128xf32>
    %83 = arith.mulf %3, %82 : vector<1x128xf32>
    %84 = arith.addf %80, %83 : vector<1x128xf32>
    %c16 = arith.constant 16 : index
    %85 = memref.load %arg1[%c16] : memref<72xf32, #tpu.memory_space<smem>>
    %86 = vector.broadcast %85 : f32 to vector<1x128xf32>
    %87 = arith.mulf %4, %86 : vector<1x128xf32>
    %88 = arith.addf %84, %87 : vector<1x128xf32>
    %c17 = arith.constant 17 : index
    %89 = memref.load %arg1[%c17] : memref<72xf32, #tpu.memory_space<smem>>
    %90 = vector.broadcast %89 : f32 to vector<1x128xf32>
    %91 = arith.mulf %5, %90 : vector<1x128xf32>
    %92 = arith.addf %88, %91 : vector<1x128xf32>
    %c18 = arith.constant 18 : index
    %93 = memref.load %arg1[%c18] : memref<72xf32, #tpu.memory_space<smem>>
    %94 = vector.broadcast %93 : f32 to vector<1x128xf32>
    %95 = arith.mulf %6, %94 : vector<1x128xf32>
    %96 = arith.addf %92, %95 : vector<1x128xf32>
    %c19 = arith.constant 19 : index
    %97 = memref.load %arg1[%c19] : memref<72xf32, #tpu.memory_space<smem>>
    %98 = vector.broadcast %97 : f32 to vector<1x128xf32>
    %99 = arith.mulf %7, %98 : vector<1x128xf32>
    %100 = arith.addf %96, %99 : vector<1x128xf32>
    %c20 = arith.constant 20 : index
    %101 = memref.load %arg1[%c20] : memref<72xf32, #tpu.memory_space<smem>>
    %102 = vector.broadcast %101 : f32 to vector<1x128xf32>
    %103 = arith.mulf %8, %102 : vector<1x128xf32>
    %104 = arith.addf %100, %103 : vector<1x128xf32>
    %c21 = arith.constant 21 : index
    %105 = memref.load %arg1[%c21] : memref<72xf32, #tpu.memory_space<smem>>
    %106 = vector.broadcast %105 : f32 to vector<1x128xf32>
    %107 = arith.mulf %9, %106 : vector<1x128xf32>
    %108 = arith.addf %104, %107 : vector<1x128xf32>
    %c22 = arith.constant 22 : index
    %109 = memref.load %arg1[%c22] : memref<72xf32, #tpu.memory_space<smem>>
    %110 = vector.broadcast %109 : f32 to vector<1x128xf32>
    %111 = arith.mulf %10, %110 : vector<1x128xf32>
    %112 = arith.addf %108, %111 : vector<1x128xf32>
    %c23 = arith.constant 23 : index
    %113 = memref.load %arg1[%c23] : memref<72xf32, #tpu.memory_space<smem>>
    %114 = vector.broadcast %113 : f32 to vector<1x128xf32>
    %115 = arith.mulf %11, %114 : vector<1x128xf32>
    %116 = arith.addf %112, %115 : vector<1x128xf32>
    %cst_27 = arith.constant 0.000000e+00 : f32
    %117 = vector.broadcast %cst_27 : f32 to vector<1x128xf32>
    %118 = arith.maximumf %116, %117 : vector<1x128xf32>
    %c1_28 = arith.constant 1 : index
    %119 = memref.load %arg3[%c1_28] : memref<6xf32, #tpu.memory_space<smem>>
    %120 = vector.broadcast %119 : f32 to vector<1x128xf32>
    %121 = arith.mulf %118, %120 : vector<1x128xf32>
    %122 = arith.addf %66, %121 : vector<1x128xf32>
    %c24 = arith.constant 24 : index
    %123 = memref.load %arg1[%c24] : memref<72xf32, #tpu.memory_space<smem>>
    %124 = vector.broadcast %123 : f32 to vector<1x128xf32>
    %125 = arith.mulf %0, %124 : vector<1x128xf32>
    %c2_29 = arith.constant 2 : index
    %126 = memref.load %arg2[%c2_29] : memref<6xf32, #tpu.memory_space<smem>>
    %127 = vector.broadcast %126 : f32 to vector<1x128xf32>
    %128 = arith.addf %125, %127 : vector<1x128xf32>
    %c25 = arith.constant 25 : index
    %129 = memref.load %arg1[%c25] : memref<72xf32, #tpu.memory_space<smem>>
    %130 = vector.broadcast %129 : f32 to vector<1x128xf32>
    %131 = arith.mulf %1, %130 : vector<1x128xf32>
    %132 = arith.addf %128, %131 : vector<1x128xf32>
    %c26 = arith.constant 26 : index
    %133 = memref.load %arg1[%c26] : memref<72xf32, #tpu.memory_space<smem>>
    %134 = vector.broadcast %133 : f32 to vector<1x128xf32>
    %135 = arith.mulf %2, %134 : vector<1x128xf32>
    %136 = arith.addf %132, %135 : vector<1x128xf32>
    %c27 = arith.constant 27 : index
    %137 = memref.load %arg1[%c27] : memref<72xf32, #tpu.memory_space<smem>>
    %138 = vector.broadcast %137 : f32 to vector<1x128xf32>
    %139 = arith.mulf %3, %138 : vector<1x128xf32>
    %140 = arith.addf %136, %139 : vector<1x128xf32>
    %c28 = arith.constant 28 : index
    %141 = memref.load %arg1[%c28] : memref<72xf32, #tpu.memory_space<smem>>
    %142 = vector.broadcast %141 : f32 to vector<1x128xf32>
    %143 = arith.mulf %4, %142 : vector<1x128xf32>
    %144 = arith.addf %140, %143 : vector<1x128xf32>
    %c29 = arith.constant 29 : index
    %145 = memref.load %arg1[%c29] : memref<72xf32, #tpu.memory_space<smem>>
    %146 = vector.broadcast %145 : f32 to vector<1x128xf32>
    %147 = arith.mulf %5, %146 : vector<1x128xf32>
    %148 = arith.addf %144, %147 : vector<1x128xf32>
    %c30 = arith.constant 30 : index
    %149 = memref.load %arg1[%c30] : memref<72xf32, #tpu.memory_space<smem>>
    %150 = vector.broadcast %149 : f32 to vector<1x128xf32>
    %151 = arith.mulf %6, %150 : vector<1x128xf32>
    %152 = arith.addf %148, %151 : vector<1x128xf32>
    %c31 = arith.constant 31 : index
    %153 = memref.load %arg1[%c31] : memref<72xf32, #tpu.memory_space<smem>>
    %154 = vector.broadcast %153 : f32 to vector<1x128xf32>
    %155 = arith.mulf %7, %154 : vector<1x128xf32>
    %156 = arith.addf %152, %155 : vector<1x128xf32>
    %c32 = arith.constant 32 : index
    %157 = memref.load %arg1[%c32] : memref<72xf32, #tpu.memory_space<smem>>
    %158 = vector.broadcast %157 : f32 to vector<1x128xf32>
    %159 = arith.mulf %8, %158 : vector<1x128xf32>
    %160 = arith.addf %156, %159 : vector<1x128xf32>
    %c33 = arith.constant 33 : index
    %161 = memref.load %arg1[%c33] : memref<72xf32, #tpu.memory_space<smem>>
    %162 = vector.broadcast %161 : f32 to vector<1x128xf32>
    %163 = arith.mulf %9, %162 : vector<1x128xf32>
    %164 = arith.addf %160, %163 : vector<1x128xf32>
    %c34 = arith.constant 34 : index
    %165 = memref.load %arg1[%c34] : memref<72xf32, #tpu.memory_space<smem>>
    %166 = vector.broadcast %165 : f32 to vector<1x128xf32>
    %167 = arith.mulf %10, %166 : vector<1x128xf32>
    %168 = arith.addf %164, %167 : vector<1x128xf32>
    %c35 = arith.constant 35 : index
    %169 = memref.load %arg1[%c35] : memref<72xf32, #tpu.memory_space<smem>>
    %170 = vector.broadcast %169 : f32 to vector<1x128xf32>
    %171 = arith.mulf %11, %170 : vector<1x128xf32>
    %172 = arith.addf %168, %171 : vector<1x128xf32>
    %cst_30 = arith.constant 0.000000e+00 : f32
    %173 = vector.broadcast %cst_30 : f32 to vector<1x128xf32>
    %174 = arith.maximumf %172, %173 : vector<1x128xf32>
    %c2_31 = arith.constant 2 : index
    %175 = memref.load %arg3[%c2_31] : memref<6xf32, #tpu.memory_space<smem>>
    %176 = vector.broadcast %175 : f32 to vector<1x128xf32>
    %177 = arith.mulf %174, %176 : vector<1x128xf32>
    %178 = arith.addf %122, %177 : vector<1x128xf32>
    %c36 = arith.constant 36 : index
    %179 = memref.load %arg1[%c36] : memref<72xf32, #tpu.memory_space<smem>>
    %180 = vector.broadcast %179 : f32 to vector<1x128xf32>
    %181 = arith.mulf %0, %180 : vector<1x128xf32>
    %c3_32 = arith.constant 3 : index
    %182 = memref.load %arg2[%c3_32] : memref<6xf32, #tpu.memory_space<smem>>
    %183 = vector.broadcast %182 : f32 to vector<1x128xf32>
    %184 = arith.addf %181, %183 : vector<1x128xf32>
    %c37 = arith.constant 37 : index
    %185 = memref.load %arg1[%c37] : memref<72xf32, #tpu.memory_space<smem>>
    %186 = vector.broadcast %185 : f32 to vector<1x128xf32>
    %187 = arith.mulf %1, %186 : vector<1x128xf32>
    %188 = arith.addf %184, %187 : vector<1x128xf32>
    %c38 = arith.constant 38 : index
    %189 = memref.load %arg1[%c38] : memref<72xf32, #tpu.memory_space<smem>>
    %190 = vector.broadcast %189 : f32 to vector<1x128xf32>
    %191 = arith.mulf %2, %190 : vector<1x128xf32>
    %192 = arith.addf %188, %191 : vector<1x128xf32>
    %c39 = arith.constant 39 : index
    %193 = memref.load %arg1[%c39] : memref<72xf32, #tpu.memory_space<smem>>
    %194 = vector.broadcast %193 : f32 to vector<1x128xf32>
    %195 = arith.mulf %3, %194 : vector<1x128xf32>
    %196 = arith.addf %192, %195 : vector<1x128xf32>
    %c40 = arith.constant 40 : index
    %197 = memref.load %arg1[%c40] : memref<72xf32, #tpu.memory_space<smem>>
    %198 = vector.broadcast %197 : f32 to vector<1x128xf32>
    %199 = arith.mulf %4, %198 : vector<1x128xf32>
    %200 = arith.addf %196, %199 : vector<1x128xf32>
    %c41 = arith.constant 41 : index
    %201 = memref.load %arg1[%c41] : memref<72xf32, #tpu.memory_space<smem>>
    %202 = vector.broadcast %201 : f32 to vector<1x128xf32>
    %203 = arith.mulf %5, %202 : vector<1x128xf32>
    %204 = arith.addf %200, %203 : vector<1x128xf32>
    %c42 = arith.constant 42 : index
    %205 = memref.load %arg1[%c42] : memref<72xf32, #tpu.memory_space<smem>>
    %206 = vector.broadcast %205 : f32 to vector<1x128xf32>
    %207 = arith.mulf %6, %206 : vector<1x128xf32>
    %208 = arith.addf %204, %207 : vector<1x128xf32>
    %c43 = arith.constant 43 : index
    %209 = memref.load %arg1[%c43] : memref<72xf32, #tpu.memory_space<smem>>
    %210 = vector.broadcast %209 : f32 to vector<1x128xf32>
    %211 = arith.mulf %7, %210 : vector<1x128xf32>
    %212 = arith.addf %208, %211 : vector<1x128xf32>
    %c44 = arith.constant 44 : index
    %213 = memref.load %arg1[%c44] : memref<72xf32, #tpu.memory_space<smem>>
    %214 = vector.broadcast %213 : f32 to vector<1x128xf32>
    %215 = arith.mulf %8, %214 : vector<1x128xf32>
    %216 = arith.addf %212, %215 : vector<1x128xf32>
    %c45 = arith.constant 45 : index
    %217 = memref.load %arg1[%c45] : memref<72xf32, #tpu.memory_space<smem>>
    %218 = vector.broadcast %217 : f32 to vector<1x128xf32>
    %219 = arith.mulf %9, %218 : vector<1x128xf32>
    %220 = arith.addf %216, %219 : vector<1x128xf32>
    %c46 = arith.constant 46 : index
    %221 = memref.load %arg1[%c46] : memref<72xf32, #tpu.memory_space<smem>>
    %222 = vector.broadcast %221 : f32 to vector<1x128xf32>
    %223 = arith.mulf %10, %222 : vector<1x128xf32>
    %224 = arith.addf %220, %223 : vector<1x128xf32>
    %c47 = arith.constant 47 : index
    %225 = memref.load %arg1[%c47] : memref<72xf32, #tpu.memory_space<smem>>
    %226 = vector.broadcast %225 : f32 to vector<1x128xf32>
    %227 = arith.mulf %11, %226 : vector<1x128xf32>
    %228 = arith.addf %224, %227 : vector<1x128xf32>
    %cst_33 = arith.constant 0.000000e+00 : f32
    %229 = vector.broadcast %cst_33 : f32 to vector<1x128xf32>
    %230 = arith.maximumf %228, %229 : vector<1x128xf32>
    %c3_34 = arith.constant 3 : index
    %231 = memref.load %arg3[%c3_34] : memref<6xf32, #tpu.memory_space<smem>>
    %232 = vector.broadcast %231 : f32 to vector<1x128xf32>
    %233 = arith.mulf %230, %232 : vector<1x128xf32>
    %234 = arith.addf %178, %233 : vector<1x128xf32>
    %c48 = arith.constant 48 : index
    %235 = memref.load %arg1[%c48] : memref<72xf32, #tpu.memory_space<smem>>
    %236 = vector.broadcast %235 : f32 to vector<1x128xf32>
    %237 = arith.mulf %0, %236 : vector<1x128xf32>
    %c4_35 = arith.constant 4 : index
    %238 = memref.load %arg2[%c4_35] : memref<6xf32, #tpu.memory_space<smem>>
    %239 = vector.broadcast %238 : f32 to vector<1x128xf32>
    %240 = arith.addf %237, %239 : vector<1x128xf32>
    %c49 = arith.constant 49 : index
    %241 = memref.load %arg1[%c49] : memref<72xf32, #tpu.memory_space<smem>>
    %242 = vector.broadcast %241 : f32 to vector<1x128xf32>
    %243 = arith.mulf %1, %242 : vector<1x128xf32>
    %244 = arith.addf %240, %243 : vector<1x128xf32>
    %c50 = arith.constant 50 : index
    %245 = memref.load %arg1[%c50] : memref<72xf32, #tpu.memory_space<smem>>
    %246 = vector.broadcast %245 : f32 to vector<1x128xf32>
    %247 = arith.mulf %2, %246 : vector<1x128xf32>
    %248 = arith.addf %244, %247 : vector<1x128xf32>
    %c51 = arith.constant 51 : index
    %249 = memref.load %arg1[%c51] : memref<72xf32, #tpu.memory_space<smem>>
    %250 = vector.broadcast %249 : f32 to vector<1x128xf32>
    %251 = arith.mulf %3, %250 : vector<1x128xf32>
    %252 = arith.addf %248, %251 : vector<1x128xf32>
    %c52 = arith.constant 52 : index
    %253 = memref.load %arg1[%c52] : memref<72xf32, #tpu.memory_space<smem>>
    %254 = vector.broadcast %253 : f32 to vector<1x128xf32>
    %255 = arith.mulf %4, %254 : vector<1x128xf32>
    %256 = arith.addf %252, %255 : vector<1x128xf32>
    %c53 = arith.constant 53 : index
    %257 = memref.load %arg1[%c53] : memref<72xf32, #tpu.memory_space<smem>>
    %258 = vector.broadcast %257 : f32 to vector<1x128xf32>
    %259 = arith.mulf %5, %258 : vector<1x128xf32>
    %260 = arith.addf %256, %259 : vector<1x128xf32>
    %c54 = arith.constant 54 : index
    %261 = memref.load %arg1[%c54] : memref<72xf32, #tpu.memory_space<smem>>
    %262 = vector.broadcast %261 : f32 to vector<1x128xf32>
    %263 = arith.mulf %6, %262 : vector<1x128xf32>
    %264 = arith.addf %260, %263 : vector<1x128xf32>
    %c55 = arith.constant 55 : index
    %265 = memref.load %arg1[%c55] : memref<72xf32, #tpu.memory_space<smem>>
    %266 = vector.broadcast %265 : f32 to vector<1x128xf32>
    %267 = arith.mulf %7, %266 : vector<1x128xf32>
    %268 = arith.addf %264, %267 : vector<1x128xf32>
    %c56 = arith.constant 56 : index
    %269 = memref.load %arg1[%c56] : memref<72xf32, #tpu.memory_space<smem>>
    %270 = vector.broadcast %269 : f32 to vector<1x128xf32>
    %271 = arith.mulf %8, %270 : vector<1x128xf32>
    %272 = arith.addf %268, %271 : vector<1x128xf32>
    %c57 = arith.constant 57 : index
    %273 = memref.load %arg1[%c57] : memref<72xf32, #tpu.memory_space<smem>>
    %274 = vector.broadcast %273 : f32 to vector<1x128xf32>
    %275 = arith.mulf %9, %274 : vector<1x128xf32>
    %276 = arith.addf %272, %275 : vector<1x128xf32>
    %c58 = arith.constant 58 : index
    %277 = memref.load %arg1[%c58] : memref<72xf32, #tpu.memory_space<smem>>
    %278 = vector.broadcast %277 : f32 to vector<1x128xf32>
    %279 = arith.mulf %10, %278 : vector<1x128xf32>
    %280 = arith.addf %276, %279 : vector<1x128xf32>
    %c59 = arith.constant 59 : index
    %281 = memref.load %arg1[%c59] : memref<72xf32, #tpu.memory_space<smem>>
    %282 = vector.broadcast %281 : f32 to vector<1x128xf32>
    %283 = arith.mulf %11, %282 : vector<1x128xf32>
    %284 = arith.addf %280, %283 : vector<1x128xf32>
    %cst_36 = arith.constant 0.000000e+00 : f32
    %285 = vector.broadcast %cst_36 : f32 to vector<1x128xf32>
    %286 = arith.maximumf %284, %285 : vector<1x128xf32>
    %c4_37 = arith.constant 4 : index
    %287 = memref.load %arg3[%c4_37] : memref<6xf32, #tpu.memory_space<smem>>
    %288 = vector.broadcast %287 : f32 to vector<1x128xf32>
    %289 = arith.mulf %286, %288 : vector<1x128xf32>
    %290 = arith.addf %234, %289 : vector<1x128xf32>
    %c60 = arith.constant 60 : index
    %291 = memref.load %arg1[%c60] : memref<72xf32, #tpu.memory_space<smem>>
    %292 = vector.broadcast %291 : f32 to vector<1x128xf32>
    %293 = arith.mulf %0, %292 : vector<1x128xf32>
    %c5_38 = arith.constant 5 : index
    %294 = memref.load %arg2[%c5_38] : memref<6xf32, #tpu.memory_space<smem>>
    %295 = vector.broadcast %294 : f32 to vector<1x128xf32>
    %296 = arith.addf %293, %295 : vector<1x128xf32>
    %c61 = arith.constant 61 : index
    %297 = memref.load %arg1[%c61] : memref<72xf32, #tpu.memory_space<smem>>
    %298 = vector.broadcast %297 : f32 to vector<1x128xf32>
    %299 = arith.mulf %1, %298 : vector<1x128xf32>
    %300 = arith.addf %296, %299 : vector<1x128xf32>
    %c62 = arith.constant 62 : index
    %301 = memref.load %arg1[%c62] : memref<72xf32, #tpu.memory_space<smem>>
    %302 = vector.broadcast %301 : f32 to vector<1x128xf32>
    %303 = arith.mulf %2, %302 : vector<1x128xf32>
    %304 = arith.addf %300, %303 : vector<1x128xf32>
    %c63 = arith.constant 63 : index
    %305 = memref.load %arg1[%c63] : memref<72xf32, #tpu.memory_space<smem>>
    %306 = vector.broadcast %305 : f32 to vector<1x128xf32>
    %307 = arith.mulf %3, %306 : vector<1x128xf32>
    %308 = arith.addf %304, %307 : vector<1x128xf32>
    %c64 = arith.constant 64 : index
    %309 = memref.load %arg1[%c64] : memref<72xf32, #tpu.memory_space<smem>>
    %310 = vector.broadcast %309 : f32 to vector<1x128xf32>
    %311 = arith.mulf %4, %310 : vector<1x128xf32>
    %312 = arith.addf %308, %311 : vector<1x128xf32>
    %c65 = arith.constant 65 : index
    %313 = memref.load %arg1[%c65] : memref<72xf32, #tpu.memory_space<smem>>
    %314 = vector.broadcast %313 : f32 to vector<1x128xf32>
    %315 = arith.mulf %5, %314 : vector<1x128xf32>
    %316 = arith.addf %312, %315 : vector<1x128xf32>
    %c66 = arith.constant 66 : index
    %317 = memref.load %arg1[%c66] : memref<72xf32, #tpu.memory_space<smem>>
    %318 = vector.broadcast %317 : f32 to vector<1x128xf32>
    %319 = arith.mulf %6, %318 : vector<1x128xf32>
    %320 = arith.addf %316, %319 : vector<1x128xf32>
    %c67 = arith.constant 67 : index
    %321 = memref.load %arg1[%c67] : memref<72xf32, #tpu.memory_space<smem>>
    %322 = vector.broadcast %321 : f32 to vector<1x128xf32>
    %323 = arith.mulf %7, %322 : vector<1x128xf32>
    %324 = arith.addf %320, %323 : vector<1x128xf32>
    %c68 = arith.constant 68 : index
    %325 = memref.load %arg1[%c68] : memref<72xf32, #tpu.memory_space<smem>>
    %326 = vector.broadcast %325 : f32 to vector<1x128xf32>
    %327 = arith.mulf %8, %326 : vector<1x128xf32>
    %328 = arith.addf %324, %327 : vector<1x128xf32>
    %c69 = arith.constant 69 : index
    %329 = memref.load %arg1[%c69] : memref<72xf32, #tpu.memory_space<smem>>
    %330 = vector.broadcast %329 : f32 to vector<1x128xf32>
    %331 = arith.mulf %9, %330 : vector<1x128xf32>
    %332 = arith.addf %328, %331 : vector<1x128xf32>
    %c70 = arith.constant 70 : index
    %333 = memref.load %arg1[%c70] : memref<72xf32, #tpu.memory_space<smem>>
    %334 = vector.broadcast %333 : f32 to vector<1x128xf32>
    %335 = arith.mulf %10, %334 : vector<1x128xf32>
    %336 = arith.addf %332, %335 : vector<1x128xf32>
    %c71 = arith.constant 71 : index
    %337 = memref.load %arg1[%c71] : memref<72xf32, #tpu.memory_space<smem>>
    %338 = vector.broadcast %337 : f32 to vector<1x128xf32>
    %339 = arith.mulf %11, %338 : vector<1x128xf32>
    %340 = arith.addf %336, %339 : vector<1x128xf32>
    %cst_39 = arith.constant 0.000000e+00 : f32
    %341 = vector.broadcast %cst_39 : f32 to vector<1x128xf32>
    %342 = arith.maximumf %340, %341 : vector<1x128xf32>
    %c5_40 = arith.constant 5 : index
    %343 = memref.load %arg3[%c5_40] : memref<6xf32, #tpu.memory_space<smem>>
    %344 = vector.broadcast %343 : f32 to vector<1x128xf32>
    %345 = arith.mulf %342, %344 : vector<1x128xf32>
    %346 = arith.addf %290, %345 : vector<1x128xf32>
    %c0_41 = arith.constant 0 : index
    %347 = memref.load %arg4[%c0_41] : memref<1xf32, #tpu.memory_space<smem>>
    %348 = vector.broadcast %347 : f32 to vector<1x128xf32>
    %349 = arith.addf %346, %348 : vector<1x128xf32>
    %c0_42 = arith.constant 0 : index
    %c0_43 = arith.constant 0 : index
    %350 = vector.load %arg6[%c0_42, %c0_43] : memref<1x128xf32, #tpu.memory_space<vmem>>, vector<1x128xf32>
    tpu.vector_store %arg6[%c0_42, %c0_43], %349 {strides = array<i32>} : memref<1x128xf32, #tpu.memory_space<vmem>>, vector<1x128xf32>,
    return
  }
  func.func @transform_0(%arg0: i32) -> i32 {
    %c0_i32 = arith.constant 0 : i32
    %c0_i32_0 = arith.constant 0 : i32
    return %c0_i32 : i32
  }
  func.func @transform_1(%arg0: i32) -> i32 {
    %c0_i32 = arith.constant 0 : i32
    %c0_i32_0 = arith.constant 0 : i32
    return %c0_i32 : i32
  }
  func.func @transform_2(%arg0: i32) -> i32 {
    %c0_i32 = arith.constant 0 : i32
    %c0_i32_0 = arith.constant 0 : i32
    return %c0_i32 : i32
  }
  func.func @transform_3(%arg0: i32) -> i32 {
    %c0_i32 = arith.constant 0 : i32
    %c0_i32_0 = arith.constant 0 : i32
    return %c0_i32 : i32
  }
  func.func @transform_4(%arg0: i32) -> (i32, i32) {
    %c0_i32 = arith.constant 0 : i32
    %c0_i32_0 = arith.constant 0 : i32
    return %c0_i32, %arg0 : i32, i32
  }
  func.func @transform_5(%arg0: i32) -> (i32, i32) {
    %c0_i32 = arith.constant 0 : i32
    %c0_i32_0 = arith.constant 0 : i32
    return %c0_i32, %arg0 : i32, i32
  }
}

</mosaic_0001>

<llo_original>
// kernel: tpu_custom_call.1
$region0: #{tpu_custom_call.1}
  #allocation0 [shape = 'u32[]', space=smem, size = 0x4, offset = 0x4, fixed_abs, tag = 'smem constant byte address 0x4 - core index']
  #allocation1 [shape = 'u32[72,128]{1,0:T(1,128)}', space=vmem, size = 0x9000, scoped, tag = 'internal scratch']
  #allocation2 [shape = 'f32[1]{0:T(128)S(6)}', space=smem, size = 0x200, scoped, tag = 'scoped memory for tpu_custom_call.1']
  %s0 = inlined_call_operand.vmem [shape: f32[72], index: 0, kind: input, shape index: {}]
  %s1 = inlined_call_operand.vmem [shape: f32[6], index: 1, kind: input, shape index: {}]
  %s2 = inlined_call_operand.vmem [shape: f32[6], index: 2, kind: input, shape index: {}]
  %s3 = inlined_call_operand.<no memory space> [shape: f32[1], index: 3, kind: input, shape index: {}]
  %s4 = inlined_call_operand.hbm [shape: f32[12,128], index: 4, kind: input, shape index: {}]
  %s5 = inlined_call_operand.hbm [shape: f32[1,128], index: 5, kind: output, shape index: {}]
  %s6 = sld [smem:[#allocation0]]
  $region46: #{tpu_custom_call.1} parent=0
    _
  %s8 = ssub.s32 1, %s6
  %s9 = scalar_select 0, %s8, %s6
  %10 = sst [smem:[#allocation2]] %s3
  $region1: #{tpu_custom_call.1} parent=0
    #allocation3 [shape = 'u8[512]{0}', space=smem, size = 0x200, scoped, tag = 'input window, operand 0, single buffered']
    #allocation4 [shape = 's32[1]{0}', space=sflag, size = 0x4, scoped, tag = 'scoped memory for tpu_custom_call.1']
    #allocation5 [shape = 's32[1]{0}', space=sflag, size = 0x4, scoped, tag = 'scoped memory for tpu_custom_call.1']
    #allocation6 [shape = 's32[1]{0}', space=sflag, size = 0x4, scoped, tag = 'scoped memory for tpu_custom_call.1']
    #allocation7 [shape = 'u8[512]{0}', space=smem, size = 0x200, scoped, tag = 'input window, operand 1, single buffered']
    #allocation8 [shape = 's32[1]{0}', space=sflag, size = 0x4, scoped, tag = 'scoped memory for tpu_custom_call.1']
    #allocation9 [shape = 'u8[512]{0}', space=smem, size = 0x200, scoped, tag = 'input window, operand 2, single buffered']
    #allocation10 [shape = 'u8[8192]{0}', space=vmem, size = 0x2000, scoped, tag = 'input window, operand 4, single buffered']
    #allocation11 [shape = 'u8[512]{0}', space=vmem, size = 0x400, scoped, tag = 'output window, operand 0, single buffered']
    %11 = vsyncpa [#allocation6], 0
    %12 = vsyncpa [#allocation8], 0
    %13 = vsyncpa [#allocation4], 0
    %14 = vsyncpa [#allocation5], 0
    // Predicated region
    $region2: #{tpu_custom_call.1} parent=1 // pred_check
      _
    $region3: #{tpu_custom_call.1} parent=1 // pred_check_branch
      %16 = sbr.rel (0) target = $region5
    $region4: #{tpu_custom_call.1} parent=1 // pred_region
      %18 = vsyncadd [#allocation6], 0
      %s20 = sshll.u32 %s0, 4
      %s21 = int_to_ptr.vmem [resolvable:$true] %s20
      %23 = dma.vmem_to_smem %s21, 16, [#allocation3], [#allocation6]
    $region5: #{tpu_custom_call.1} parent=1 // pred_fallthru
      _
    // Predicated region
    $region6: #{tpu_custom_call.1} parent=1 // pred_check
      _
    $region7: #{tpu_custom_call.1} parent=1 // pred_check_branch
      %25 = sbr.rel (0) target = $region9
    $region8: #{tpu_custom_call.1} parent=1 // pred_region
      %27 = vsyncadd [#allocation8], 0
      %s29 = sshll.u32 %s1, 4
      %s30 = int_to_ptr.vmem [resolvable:$true] %s29
      %32 = dma.vmem_to_smem %s30, 16, [#allocation7], [#allocation8]
    $region9: #{tpu_custom_call.1} parent=1 // pred_fallthru
      _
    // Predicated region
    $region10: #{tpu_custom_call.1} parent=1 // pred_check
      _
    $region11: #{tpu_custom_call.1} parent=1 // pred_check_branch
      %34 = sbr.rel (0) target = $region13
    $region12: #{tpu_custom_call.1} parent=1 // pred_region
      %36 = vsyncadd [#allocation8], 0
      %s38 = sshll.u32 %s2, 4
      %s39 = int_to_ptr.vmem [resolvable:$true] %s38
      %41 = dma.vmem_to_smem %s39, 16, [#allocation9], [#allocation8]
    $region13: #{tpu_custom_call.1} parent=1 // pred_fallthru
      _
    // Predicated region
    $region14: #{tpu_custom_call.1} parent=1 // pred_check
      _
    $region15: #{tpu_custom_call.1} parent=1 // pred_check_branch
      %43 = sbr.rel (0) target = $region17
    $region16: #{tpu_custom_call.1} parent=1 // pred_region
      _
    $region17: #{tpu_custom_call.1} parent=1 // pred_fallthru
      _
    // Predicated region
    $region18: #{tpu_custom_call.1} parent=1 // pred_check
      _
    $region19: #{tpu_custom_call.1} parent=1 // pred_check_branch
      %45 = sbr.rel (0) target = $region21
    $region20: #{tpu_custom_call.1} parent=1 // pred_region
      %47 = vsyncadd [#allocation4], 0
      %s48 = sshll.u32 %s4, 4
      %s49 = int_to_ptr.hbm [resolvable:$true] %s48
      %s50 = sshll.u32 [#allocation10], 4
      %s51 = int_to_ptr.vmem [resolvable:$true] %s50
      %56 = dma.hbm_to_vmem [thread:$0]  %s49, 256, %s51, [#allocation4], 128, 128, 8
    $region21: #{tpu_custom_call.1} parent=1 // pred_fallthru
      _
    // Predicated region
    $region22: #{tpu_custom_call.1} parent=1 // pred_check
      _
    $region23: #{tpu_custom_call.1} parent=1 // pred_check_branch
      %58 = sbr.rel (0) target = $region25
    $region24: #{tpu_custom_call.1} parent=1 // pred_region
      %60 = dma.done [#allocation6], 16
    $region25: #{tpu_custom_call.1} parent=1 // pred_fallthru
      _
    // Predicated region
    $region26: #{tpu_custom_call.1} parent=1 // pred_check
      _
    $region27: #{tpu_custom_call.1} parent=1 // pred_check_branch
      %62 = sbr.rel (0) target = $region29
    $region28: #{tpu_custom_call.1} parent=1 // pred_region
      %64 = dma.done [#allocation8], 16
    $region29: #{tpu_custom_call.1} parent=1 // pred_fallthru
      _
    // Predicated region
    $region30: #{tpu_custom_call.1} parent=1 // pred_check
      _
    $region31: #{tpu_custom_call.1} parent=1 // pred_check_branch
      %66 = sbr.rel (0) target = $region33
    $region32: #{tpu_custom_call.1} parent=1 // pred_region
      %68 = dma.done [#allocation8], 16
    $region33: #{tpu_custom_call.1} parent=1 // pred_fallthru
      _
    // Predicated region
    $region34: #{tpu_custom_call.1} parent=1 // pred_check
      _
    $region35: #{tpu_custom_call.1} parent=1 // pred_check_branch
      %70 = sbr.rel (0) target = $region37
    $region36: #{tpu_custom_call.1} parent=1 // pred_region
      %72 = dma.done [#allocation4], 256
    $region37: #{tpu_custom_call.1} parent=1 // pred_fallthru
      _
    %73 = sfence
    %v74 = vld [vmem:[#allocation10] sm:$0x1]
    %v75 = vld [vmem:[#allocation10 + $0x1] sm:$0x1]
    %v76 = vld [vmem:[#allocation10 + $0x2] sm:$0x1]
    %v77 = vld [vmem:[#allocation10 + $0x3] sm:$0x1]
    %v78 = vld [vmem:[#allocation10 + $0x4] sm:$0x1]
    %v79 = vld [vmem:[#allocation10 + $0x5] sm:$0x1]
    %v80 = vld [vmem:[#allocation10 + $0x6] sm:$0x1]
    %v81 = vld [vmem:[#allocation10 + $0x7] sm:$0x1]
    %v82 = vld [vmem:[#allocation10 + $0x8] sm:$0x1]
    %v83 = vld [vmem:[#allocation10 + $0x9] sm:$0x1]
    %v84 = vld [vmem:[#allocation10 + $0xa] sm:$0x1]
    %v85 = vld [vmem:[#allocation10 + $0xb] sm:$0x1]
    %s86 = sld [smem:[#allocation3]]
    %v87 = vstv %s86
    %v88 = vmul.f32 %v74, %v87
    %s89 = sld [smem:[#allocation7]]
    %v90 = vstv %s89
    %v91 = vadd.f32 %v88, %v90
    %s92 = sld [smem:[#allocation3 + $0x1]]
    %v93 = vstv %s92
    %v94 = vmul.f32 %v75, %v93
    %v95 = vadd.f32 %v91, %v94
    %s96 = sld [smem:[#allocation3 + $0x2]]
    %v97 = vstv %s96
    %v98 = vmul.f32 %v76, %v97
    %v99 = vadd.f32 %v95, %v98
    %s100 = sld [smem:[#allocation3 + $0x3]]
    %v101 = vstv %s100
    %v102 = vmul.f32 %v77, %v101
    %v103 = vadd.f32 %v99, %v102
    %s104 = sld [smem:[#allocation3 + $0x4]]
    %v105 = vstv %s104
    %v106 = vmul.f32 %v78, %v105
    %v107 = vadd.f32 %v103, %v106
    %s108 = sld [smem:[#allocation3 + $0x5]]
    %v109 = vstv %s108
    %v110 = vmul.f32 %v79, %v109
    %v111 = vadd.f32 %v107, %v110
    %s112 = sld [smem:[#allocation3 + $0x6]]
    %v113 = vstv %s112
    %v114 = vmul.f32 %v80, %v113
    %v115 = vadd.f32 %v111, %v114
    %s116 = sld [smem:[#allocation3 + $0x7]]
    %v117 = vstv %s116
    %v118 = vmul.f32 %v81, %v117
    %v119 = vadd.f32 %v115, %v118
    %s120 = sld [smem:[#allocation3 + $0x8]]
    %v121 = vstv %s120
    %v122 = vmul.f32 %v82, %v121
    %v123 = vadd.f32 %v119, %v122
    %s124 = sld [smem:[#allocation3 + $0x9]]
    %v125 = vstv %s124
    %v126 = vmul.f32 %v83, %v125
    %v127 = vadd.f32 %v123, %v126
    %s128 = sld [smem:[#allocation3 + $0xa]]
    %v129 = vstv %s128
    %v130 = vmul.f32 %v84, %v129
    %v131 = vadd.f32 %v127, %v130
    %s132 = sld [smem:[#allocation3 + $0xb]]
    %v133 = vstv %s132
    %v134 = vmul.f32 %v85, %v133
    %v135 = vadd.f32 %v131, %v134
    %v136 = vmax.f32 %v135, 0.0
    %s137 = sld [smem:[#allocation9]]
    %v138 = vstv %s137
    %v139 = vmul.f32 %v136, %v138
    %s140 = sld [smem:[#allocation3 + $0xc]]
    %v141 = vstv %s140
    %v142 = vmul.f32 %v74, %v141
    %s143 = sld [smem:[#allocation7 + $0x1]]
    %v144 = vstv %s143
    %v145 = vadd.f32 %v142, %v144
    %s146 = sld [smem:[#allocation3 + $0xd]]
    %v147 = vstv %s146
    %v148 = vmul.f32 %v75, %v147
    %v149 = vadd.f32 %v145, %v148
    %s150 = sld [smem:[#allocation3 + $0xe]]
    %v151 = vstv %s150
    %v152 = vmul.f32 %v76, %v151
    %v153 = vadd.f32 %v149, %v152
    %s154 = sld [smem:[#allocation3 + $0xf]]
    %v155 = vstv %s154
    %v156 = vmul.f32 %v77, %v155
    %v157 = vadd.f32 %v153, %v156
    %s158 = sld [smem:[#allocation3 + $0x10]]
    %v159 = vstv %s158
    %v160 = vmul.f32 %v78, %v159
    %v161 = vadd.f32 %v157, %v160
    %s162 = sld [smem:[#allocation3 + $0x11]]
    %v163 = vstv %s162
    %v164 = vmul.f32 %v79, %v163
    %v165 = vadd.f32 %v161, %v164
    %s166 = sld [smem:[#allocation3 + $0x12]]
    %v167 = vstv %s166
    %v168 = vmul.f32 %v80, %v167
    %v169 = vadd.f32 %v165, %v168
    %s170 = sld [smem:[#allocation3 + $0x13]]
    %v171 = vstv %s170
    %v172 = vmul.f32 %v81, %v171
    %v173 = vadd.f32 %v169, %v172
    %s174 = sld [smem:[#allocation3 + $0x14]]
    %v175 = vstv %s174
    %v176 = vmul.f32 %v82, %v175
    %v177 = vadd.f32 %v173, %v176
    %s178 = sld [smem:[#allocation3 + $0x15]]
    %v179 = vstv %s178
    %v180 = vmul.f32 %v83, %v179
    %v181 = vadd.f32 %v177, %v180
    %s182 = sld [smem:[#allocation3 + $0x16]]
    %v183 = vstv %s182
    %v184 = vmul.f32 %v84, %v183
    %v185 = vadd.f32 %v181, %v184
    %s186 = sld [smem:[#allocation3 + $0x17]]
    %v187 = vstv %s186
    %v188 = vmul.f32 %v85, %v187
    %v189 = vadd.f32 %v185, %v188
    %v190 = vmax.f32 %v189, 0.0
    %s191 = sld [smem:[#allocation9 + $0x1]]
    %v192 = vstv %s191
    %v193 = vmul.f32 %v190, %v192
    %v194 = vadd.f32 %v139, %v193
    %s195 = sld [smem:[#allocation3 + $0x18]]
    %v196 = vstv %s195
    %v197 = vmul.f32 %v74, %v196
    %s198 = sld [smem:[#allocation7 + $0x2]]
    %v199 = vstv %s198
    %v200 = vadd.f32 %v197, %v199
    %s201 = sld [smem:[#allocation3 + $0x19]]
    %v202 = vstv %s201
    %v203 = vmul.f32 %v75, %v202
    %v204 = vadd.f32 %v200, %v203
    %s205 = sld [smem:[#allocation3 + $0x1a]]
    %v206 = vstv %s205
    %v207 = vmul.f32 %v76, %v206
    %v208 = vadd.f32 %v204, %v207
    %s209 = sld [smem:[#allocation3 + $0x1b]]
    %v210 = vstv %s209
    %v211 = vmul.f32 %v77, %v210
    %v212 = vadd.f32 %v208, %v211
    %s213 = sld [smem:[#allocation3 + $0x1c]]
    %v214 = vstv %s213
    %v215 = vmul.f32 %v78, %v214
    %v216 = vadd.f32 %v212, %v215
    %s217 = sld [smem:[#allocation3 + $0x1d]]
    %v218 = vstv %s217
    %v219 = vmul.f32 %v79, %v218
    %v220 = vadd.f32 %v216, %v219
    %s221 = sld [smem:[#allocation3 + $0x1e]]
    %v222 = vstv %s221
    %v223 = vmul.f32 %v80, %v222
    %v224 = vadd.f32 %v220, %v223
    %s225 = sld [smem:[#allocation3 + $0x1f]]
    %v226 = vstv %s225
    %v227 = vmul.f32 %v81, %v226
    %v228 = vadd.f32 %v224, %v227
    %s229 = sld [smem:[#allocation3 + $0x20]]
    %v230 = vstv %s229
    %v231 = vmul.f32 %v82, %v230
    %v232 = vadd.f32 %v228, %v231
    %s233 = sld [smem:[#allocation3 + $0x21]]
    %v234 = vstv %s233
    %v235 = vmul.f32 %v83, %v234
    %v236 = vadd.f32 %v232, %v235
    %s237 = sld [smem:[#allocation3 + $0x22]]
    %v238 = vstv %s237
    %v239 = vmul.f32 %v84, %v238
    %v240 = vadd.f32 %v236, %v239
    %s241 = sld [smem:[#allocation3 + $0x23]]
    %v242 = vstv %s241
    %v243 = vmul.f32 %v85, %v242
    %v244 = vadd.f32 %v240, %v243
    %v245 = vmax.f32 %v244, 0.0
    %s246 = sld [smem:[#allocation9 + $0x2]]
    %v247 = vstv %s246
    %v248 = vmul.f32 %v245, %v247
    %v249 = vadd.f32 %v194, %v248
    %s250 = sld [smem:[#allocation3 + $0x24]]
    %v251 = vstv %s250
    %v252 = vmul.f32 %v74, %v251
    %s253 = sld [smem:[#allocation7 + $0x3]]
    %v254 = vstv %s253
    %v255 = vadd.f32 %v252, %v254
    %s256 = sld [smem:[#allocation3 + $0x25]]
    %v257 = vstv %s256
    %v258 = vmul.f32 %v75, %v257
    %v259 = vadd.f32 %v255, %v258
    %s260 = sld [smem:[#allocation3 + $0x26]]
    %v261 = vstv %s260
    %v262 = vmul.f32 %v76, %v261
    %v263 = vadd.f32 %v259, %v262
    %s264 = sld [smem:[#allocation3 + $0x27]]
    %v265 = vstv %s264
    %v266 = vmul.f32 %v77, %v265
    %v267 = vadd.f32 %v263, %v266
    %s268 = sld [smem:[#allocation3 + $0x28]]
    %v269 = vstv %s268
    %v270 = vmul.f32 %v78, %v269
    %v271 = vadd.f32 %v267, %v270
    %s272 = sld [smem:[#allocation3 + $0x29]]
    %v273 = vstv %s272
    %v274 = vmul.f32 %v79, %v273
    %v275 = vadd.f32 %v271, %v274
    %s276 = sld [smem:[#allocation3 + $0x2a]]
    %v277 = vstv %s276
    %v278 = vmul.f32 %v80, %v277
    %v279 = vadd.f32 %v275, %v278
    %s280 = sld [smem:[#allocation3 + $0x2b]]
    %v281 = vstv %s280
    %v282 = vmul.f32 %v81, %v281
    %v283 = vadd.f32 %v279, %v282
    %s284 = sld [smem:[#allocation3 + $0x2c]]
    %v285 = vstv %s284
    %v286 = vmul.f32 %v82, %v285
    %v287 = vadd.f32 %v283, %v286
    %s288 = sld [smem:[#allocation3 + $0x2d]]
    %v289 = vstv %s288
    %v290 = vmul.f32 %v83, %v289
    %v291 = vadd.f32 %v287, %v290
    %s292 = sld [smem:[#allocation3 + $0x2e]]
    %v293 = vstv %s292
    %v294 = vmul.f32 %v84, %v293
    %v295 = vadd.f32 %v291, %v294
    %s296 = sld [smem:[#allocation3 + $0x2f]]
    %v297 = vstv %s296
    %v298 = vmul.f32 %v85, %v297
    %v299 = vadd.f32 %v295, %v298
    %v300 = vmax.f32 %v299, 0.0
    %s301 = sld [smem:[#allocation9 + $0x3]]
    %v302 = vstv %s301
    %v303 = vmul.f32 %v300, %v302
    %v304 = vadd.f32 %v249, %v303
    %s305 = sld [smem:[#allocation3 + $0x30]]
    %v306 = vstv %s305
    %v307 = vmul.f32 %v74, %v306
    %s308 = sld [smem:[#allocation7 + $0x4]]
    %v309 = vstv %s308
    %v310 = vadd.f32 %v307, %v309
    %s311 = sld [smem:[#allocation3 + $0x31]]
    %v312 = vstv %s311
    %v313 = vmul.f32 %v75, %v312
    %v314 = vadd.f32 %v310, %v313
    %s315 = sld [smem:[#allocation3 + $0x32]]
    %v316 = vstv %s315
    %v317 = vmul.f32 %v76, %v316
    %v318 = vadd.f32 %v314, %v317
    %s319 = sld [smem:[#allocation3 + $0x33]]
    %v320 = vstv %s319
    %v321 = vmul.f32 %v77, %v320
    %v322 = vadd.f32 %v318, %v321
    %s323 = sld [smem:[#allocation3 + $0x34]]
    %v324 = vstv %s323
    %v325 = vmul.f32 %v78, %v324
    %v326 = vadd.f32 %v322, %v325
    %s327 = sld [smem:[#allocation3 + $0x35]]
    %v328 = vstv %s327
    %v329 = vmul.f32 %v79, %v328
    %v330 = vadd.f32 %v326, %v329
    %s331 = sld [smem:[#allocation3 + $0x36]]
    %v332 = vstv %s331
    %v333 = vmul.f32 %v80, %v332
    %v334 = vadd.f32 %v330, %v333
    %s335 = sld [smem:[#allocation3 + $0x37]]
    %v336 = vstv %s335
    %v337 = vmul.f32 %v81, %v336
    %v338 = vadd.f32 %v334, %v337
    %s339 = sld [smem:[#allocation3 + $0x38]]
    %v340 = vstv %s339
    %v341 = vmul.f32 %v82, %v340
    %v342 = vadd.f32 %v338, %v341
    %s343 = sld [smem:[#allocation3 + $0x39]]
    %v344 = vstv %s343
    %v345 = vmul.f32 %v83, %v344
    %v346 = vadd.f32 %v342, %v345
    %s347 = sld [smem:[#allocation3 + $0x3a]]
    %v348 = vstv %s347
    %v349 = vmul.f32 %v84, %v348
    %v350 = vadd.f32 %v346, %v349
    %s351 = sld [smem:[#allocation3 + $0x3b]]
    %v352 = vstv %s351
    %v353 = vmul.f32 %v85, %v352
    %v354 = vadd.f32 %v350, %v353
    %v355 = vmax.f32 %v354, 0.0
    %s356 = sld [smem:[#allocation9 + $0x4]]
    %v357 = vstv %s356
    %v358 = vmul.f32 %v355, %v357
    %v359 = vadd.f32 %v304, %v358
    %s360 = sld [smem:[#allocation3 + $0x3c]]
    %v361 = vstv %s360
    %v362 = vmul.f32 %v74, %v361
    %s363 = sld [smem:[#allocation7 + $0x5]]
    %v364 = vstv %s363
    %v365 = vadd.f32 %v362, %v364
    %s366 = sld [smem:[#allocation3 + $0x3d]]
    %v367 = vstv %s366
    %v368 = vmul.f32 %v75, %v367
    %v369 = vadd.f32 %v365, %v368
    %s370 = sld [smem:[#allocation3 + $0x3e]]
    %v371 = vstv %s370
    %v372 = vmul.f32 %v76, %v371
    %v373 = vadd.f32 %v369, %v372
    %s374 = sld [smem:[#allocation3 + $0x3f]]
    %v375 = vstv %s374
    %v376 = vmul.f32 %v77, %v375
    %v377 = vadd.f32 %v373, %v376
    %s378 = sld [smem:[#allocation3 + $0x40]]
    %v379 = vstv %s378
    %v380 = vmul.f32 %v78, %v379
    %v381 = vadd.f32 %v377, %v380
    %s382 = sld [smem:[#allocation3 + $0x41]]
    %v383 = vstv %s382
    %v384 = vmul.f32 %v79, %v383
    %v385 = vadd.f32 %v381, %v384
    %s386 = sld [smem:[#allocation3 + $0x42]]
    %v387 = vstv %s386
    %v388 = vmul.f32 %v80, %v387
    %v389 = vadd.f32 %v385, %v388
    %s390 = sld [smem:[#allocation3 + $0x43]]
    %v391 = vstv %s390
    %v392 = vmul.f32 %v81, %v391
    %v393 = vadd.f32 %v389, %v392
    %s394 = sld [smem:[#allocation3 + $0x44]]
    %v395 = vstv %s394
    %v396 = vmul.f32 %v82, %v395
    %v397 = vadd.f32 %v393, %v396
    %s398 = sld [smem:[#allocation3 + $0x45]]
    %v399 = vstv %s398
    %v400 = vmul.f32 %v83, %v399
    %v401 = vadd.f32 %v397, %v400
    %s402 = sld [smem:[#allocation3 + $0x46]]
    %v403 = vstv %s402
    %v404 = vmul.f32 %v84, %v403
    %v405 = vadd.f32 %v401, %v404
    %s406 = sld [smem:[#allocation3 + $0x47]]
    %v407 = vstv %s406
    %v408 = vmul.f32 %v85, %v407
    %v409 = vadd.f32 %v405, %v408
    %v410 = vmax.f32 %v409, 0.0
    %s411 = sld [smem:[#allocation9 + $0x5]]
    %v412 = vstv %s411
    %v413 = vmul.f32 %v410, %v412
    %v414 = vadd.f32 %v359, %v413
    %s415 = sld [smem:[#allocation2]]
    %v416 = vstv %s415
    %v417 = vadd.f32 %v414, %v416
    %418 = vst [vmem:[#allocation11] sm:$0x1] %v417
    // Predicated region
    $region38: #{tpu_custom_call.1} parent=1 // pred_check
      _
    $region39: #{tpu_custom_call.1} parent=1 // pred_check_branch
      %420 = sbr.rel (0) target = $region41
    $region40: #{tpu_custom_call.1} parent=1 // pred_region
      %422 = vsyncadd [#allocation5], 0
      %s424 = sshll.u32 [#allocation11], 4
      %s425 = int_to_ptr.vmem [resolvable:$true] %s424
      %s426 = sshll.u32 %s5, 4
      %s427 = int_to_ptr.hbm [resolvable:$true] %s426
      %429 = dma.vmem_to_hbm [thread:$0]  %s425, 16, %s427, [#allocation5]
    $region41: #{tpu_custom_call.1} parent=1 // pred_fallthru
      _
    // Predicated region
    $region42: #{tpu_custom_call.1} parent=1 // pred_check
      _
    $region43: #{tpu_custom_call.1} parent=1 // pred_check_branch
      %431 = sbr.rel (0) target = $region45
    $region44: #{tpu_custom_call.1} parent=1 // pred_region
      %433 = dma.done [#allocation5], 16
    $region45: #{tpu_custom_call.1} parent=1 // pred_fallthru
      _
    %434 = vsyncpa [#allocation4], 1
    %435 = vsyncpa [#allocation5], 1
    %436 = vsyncpa [#allocation6], 1
    %437 = vsyncpa [#allocation8], 1

</llo_original>
